<compile_context>
chip_gen: v5e
topology: v5e:2x2
jax: 0.10.0
libtpu: 0.0.40
codegen_flags: <defaults>
</compile_context>

<pallas_src>
import functools
import math

import jax
import jax.numpy as jnp
from jax.experimental import pallas as pl
from jax.experimental.pallas import tpu as pltpu


def _choose_fold(embed: int, n: int, max_fold: int = 128,
                 max_weight_bytes: int = 2 << 20) -> int:
    """Pick how many time values to pack per (input row / output row-group).

    Constraints: (fold * embed) % 128 == 0 (lane-dense output stores) and the
    block-diagonal fused weight (fold, fold*embed) stays small.  Prefer a fold
    that divides n exactly so the wrapper needs no pad / output slice copy.
    """
    m = 128 // math.gcd(embed, 128)          # minimal lane-dense fold
    f = m
    while f + m <= max_fold and (f + m) * (f + m) * embed * 4 <= max_weight_bytes:
        f += m
    cand = f
    while cand >= m and n % cand != 0:
        cand -= m
    return cand if cand >= m else f


def _choose_tile_rows(rows: int, w_lanes: int,
                      target_block_bytes: int = 4 << 20) -> int:
    """Folded rows per grid step: ~target_block_bytes f32 output block."""
    tile = max(8, (target_block_bytes // (w_lanes * 4)) // 8 * 8)
    if rows <= tile:
        tile = rows                          # single full-dim block (always legal)
    if rows >= 16:
        # Guarantee >=2 grid steps so v7x's 2 TensorCores both get work.
        half = (((rows + 1) // 2) + 7) // 8 * 8
        tile = min(tile, half)
    return tile


def _time_embed_kernel(tt_ref, w_ref, b_ref, mask_ref, out_ref, *, fold: int):
    # tt_ref:   (tile_rows, fold)       fold time values per row (lane-dense)
    # w_ref:    (fold, fold*E)          block-diagonal fused weight (resident)
    # b_ref:    (1, fold*E)             fused bias tiled fold times (resident)
    # mask_ref: (1, fold*E)             1.0 on linear (no-sin) columns (resident)
    # out_ref:  (tile_rows, fold*E)
    x = jnp.log(tt_ref[...] + 1e-5)                                  # (tm, fold)

    if fold == 1:
        # Degenerate case: plain VPU broadcast multiply (no MXU for K=1).
        y = x * w_ref[...] + b_ref[...]
    else:
        # Block-diagonal matmul broadcasts each x value to its E-lane output
        # group and applies the weights in the same MXU pass.  HIGHEST keeps
        # x at ~f32 accuracy before sin(); the extra passes hide under stores.
        y = jnp.dot(x, w_ref[...],
                    preferred_element_type=jnp.float32,
                    precision=jax.lax.Precision.HIGHEST) + b_ref[...]

    # Column 0 of each E-group is the Linear(1,1) output (no sin); the rest
    # get sin().  The mask is a trace-time constant streamed once (resident).
    out_ref[...] = jnp.where(mask_ref[...] != 0.0, y, jnp.sin(y))


def time_embedding(tt, w_comb, b_comb):
    """tt: (B, S, 1) float32.  w_comb/b_comb: (E,) fused [linear | periodic].
    Returns (B, S, E) float32."""
    B, S, _ = tt.shape
    E = int(w_comb.shape[-1])
    N = B * S

    fold = _choose_fold(E, N)
    W = fold * E
    rows = pl.cdiv(N, fold)
    n_fold = rows * fold

    tt_flat = tt.reshape(N)
    if n_fold != N:
        # Only for N % fold != 0: pad with a harmless positive value.
        tt_flat = jnp.pad(tt_flat, (0, n_fold - N), constant_values=1.0)
    tt_fold = tt_flat.reshape(rows, fold)

    # Block-diagonal fused weight (fold, fold*E), tiled bias and column mask.
    w_fold = jnp.kron(jnp.eye(fold, dtype=w_comb.dtype), w_comb.reshape(1, E))
    b_fold = jnp.tile(b_comb.reshape(1, E), (1, fold))
    lin_mask = (jnp.arange(W, dtype=jnp.int32) % E == 0)
    lin_mask = lin_mask.astype(jnp.float32).reshape(1, W)

    tile_rows = _choose_tile_rows(rows, W)
    grid = pl.cdiv(rows, tile_rows)           # partial last block is masked

    kernel = functools.partial(_time_embed_kernel, fold=fold)

    out_fold = pl.pallas_call(
        kernel,
        out_shape=jax.ShapeDtypeStruct((rows, W), jnp.float32),
        grid_spec=pltpu.PrefetchScalarGridSpec(
            num_scalar_prefetch=0,
            grid=(grid,),
            in_specs=[
                pl.BlockSpec((tile_rows, fold), lambda i: (i, 0)),  # tt tile
                pl.BlockSpec((fold, W), lambda i: (0, 0)),          # weight (resident)
                pl.BlockSpec((1, W), lambda i: (0, 0)),             # bias (resident)
                pl.BlockSpec((1, W), lambda i: (0, 0)),             # lin mask (resident)
            ],
            out_specs=pl.BlockSpec((tile_rows, W), lambda i: (i, 0)),
        ),
        compiler_params=pltpu.CompilerParams(
            dimension_semantics=("parallel",),
            vmem_limit_bytes=32 * 1024 * 1024),
    )(tt_fold, w_fold, b_fold, lin_mask)

    # (rows, fold*E) viewed row-major is exactly (rows*fold, E).
    out_flat = out_fold.reshape(n_fold, E)
    if n_fold != N:
        out_flat = out_flat[:N]
    return out_flat.reshape(B, S, E)


def reference(tt, w_lin, b_lin, w_per, b_per):
    """Pure-JAX reference mirroring the PyTorch forward exactly."""
    x = jnp.log(tt + 1e-5)                                  # (B, S, 1)
    out1 = x @ w_lin.T + b_lin                              # (B, S, 1)
    out2 = jnp.sin(x @ w_per.T + b_per)                     # (B, S, E-1)
    return jnp.concatenate([out1, out2], axis=-1)


if __name__ == "__main__":
    # Small shapes: batch=2, seq=8, embed_time=32
    B, S, EMBED_TIME = 2, 8, 32

    key = jax.random.PRNGKey(0)
    k_t, k_wl, k_wp = jax.random.split(key, 3)

    # Positive time values (log(tt + 1e-5) must be well-defined)
    tt = jax.random.uniform(k_t, (B, S, 1), dtype=jnp.float32,
                            minval=0.0, maxval=5.0)

    # Parameters (utils.init_network_weights: weight ~ N(0, 0.1), bias = 0)
    w_lin = 0.1 * jax.random.normal(k_wl, (1, 1), dtype=jnp.float32)            # Linear(1,1).weight
    b_lin = jnp.zeros((1,), dtype=jnp.float32)
    w_per = 0.1 * jax.random.normal(k_wp, (EMBED_TIME - 1, 1), dtype=jnp.float32)  # Linear(1,E-1).weight
    b_per = jnp.zeros((EMBED_TIME - 1,), dtype=jnp.float32)

    # Fuse the two Linear(1, .) layers: combined (E,) weight/bias; column 0 is
    # the plain linear output, columns 1..E-1 get sin() (baked into the kernel).
    w_comb = jnp.concatenate([w_lin[:, 0], w_per[:, 0]])   # (E,)
    b_comb = jnp.concatenate([b_lin, b_per])               # (E,)

    out = time_embedding(tt, w_comb, b_comb)
    out = jax.block_until_ready(out)

    ref = reference(tt, w_lin, b_lin, w_per, b_per)
    assert out.shape == (B, S, EMBED_TIME), out.shape
    assert jnp.allclose(out, ref, atol=1e-5, rtol=1e-5), \
        float(jnp.max(jnp.abs(out - ref)))

    print("KERNEL_OK")
</pallas_src>

<mosaic_0001>
module attributes {stable_mosaic.version = 11 : i64} {
  func.func @_time_embed_kernel(%arg0: i32, %arg1: memref<1x16xf32, #tpu.memory_space<vmem>>, %arg2: memref<16x512xf32, #tpu.memory_space<vmem>>, %arg3: memref<1x512xf32, #tpu.memory_space<vmem>>, %arg4: memref<1x512xf32, #tpu.memory_space<vmem>>, %arg5: memref<1x512xf32, #tpu.memory_space<vmem>>) attributes {dimension_semantics = [#tpu.dimension_semantics<parallel>], iteration_bounds = array<i64: 1>, scalar_prefetch = 0 : i64, scratch_operands = 0 : i64, tpu.core_type = #tpu.core_type<tc>, window_params = [{transform_indices = @transform_0, window_bounds = array<i64: 1, 16>}, {pipeline_mode = #tpu.pipeline_mode<synchronous>, transform_indices = @transform_1, window_bounds = array<i64: 16, 512>}, {pipeline_mode = #tpu.pipeline_mode<synchronous>, transform_indices = @transform_2, window_bounds = array<i64: 1, 512>}, {pipeline_mode = #tpu.pipeline_mode<synchronous>, transform_indices = @transform_3, window_bounds = array<i64: 1, 512>}, {transform_indices = @transform_4, window_bounds = array<i64: 1, 512>}]} {
    %c0 = arith.constant 0 : index
    %c0_0 = arith.constant 0 : index
    %0 = vector.load %arg1[%c0, %c0_0] : memref<1x16xf32, #tpu.memory_space<vmem>>, vector<1x16xf32>
    %cst = arith.constant 9.99999974E-6 : f32
    %1 = vector.broadcast %cst : f32 to vector<1x16xf32>
    %2 = arith.addf %0, %1 : vector<1x16xf32>
    %3 = math.log %2 : vector<1x16xf32>
    %c0_1 = arith.constant 0 : index
    %c0_2 = arith.constant 0 : index
    %4 = vector.load %arg2[%c0_1, %c0_2] : memref<16x512xf32, #tpu.memory_space<vmem>>, vector<16x512xf32>
    %cst_3 = arith.constant dense<0.000000e+00> : vector<1x512xf32>
    %5 = tpu.matmul %3, %4, %cst_3 {dimension_numbers = #tpu.dot_dimension_numbers<[1], [0], [0], [1], [0, 0, 1, 1], [], []>, precision = #tpu.contract_precision<fp32>} : vector<1x16xf32>, vector<16x512xf32>, vector<1x512xf32> -> vector<1x512xf32>
    %c0_4 = arith.constant 0 : index
    %c0_5 = arith.constant 0 : index
    %6 = vector.load %arg3[%c0_4, %c0_5] : memref<1x512xf32, #tpu.memory_space<vmem>>, vector<1x512xf32>
    %7 = arith.addf %5, %6 : vector<1x512xf32>
    %c0_6 = arith.constant 0 : index
    %c0_7 = arith.constant 0 : index
    %8 = vector.load %arg4[%c0_6, %c0_7] : memref<1x512xf32, #tpu.memory_space<vmem>>, vector<1x512xf32>
    %cst_8 = arith.constant 0.000000e+00 : f32
    %9 = vector.broadcast %cst_8 : f32 to vector<1x512xf32>
    %10 = arith.cmpf one, %8, %9 : vector<1x512xf32>
    %11 = math.sin %7 : vector<1x512xf32>
    %12 = arith.select %10, %7, %11 : vector<1x512xi1>, vector<1x512xf32>
    %c0_9 = arith.constant 0 : index
    %c0_10 = arith.constant 0 : index
    %13 = vector.load %arg5[%c0_9, %c0_10] : memref<1x512xf32, #tpu.memory_space<vmem>>, vector<1x512xf32>
    tpu.vector_store %arg5[%c0_9, %c0_10], %12 {strides = array<i32>} : memref<1x512xf32, #tpu.memory_space<vmem>>, vector<1x512xf32>,
    return
  }
  func.func @transform_0(%arg0: i32) -> (i32, i32) {
    %c0_i32 = arith.constant 0 : i32
    %c0_i32_0 = arith.constant 0 : i32
    return %arg0, %c0_i32 : i32, i32
  }
  func.func @transform_1(%arg0: i32) -> (i32, i32) {
    %c0_i32 = arith.constant 0 : i32
    %c0_i32_0 = arith.constant 0 : i32
    %c0_i32_1 = arith.constant 0 : i32
    return %c0_i32, %c0_i32_0 : i32, i32
  }
  func.func @transform_2(%arg0: i32) -> (i32, i32) {
    %c0_i32 = arith.constant 0 : i32
    %c0_i32_0 = arith.constant 0 : i32
    %c0_i32_1 = arith.constant 0 : i32
    return %c0_i32, %c0_i32_0 : i32, i32
  }
  func.func @transform_3(%arg0: i32) -> (i32, i32) {
    %c0_i32 = arith.constant 0 : i32
    %c0_i32_0 = arith.constant 0 : i32
    %c0_i32_1 = arith.constant 0 : i32
    return %c0_i32, %c0_i32_0 : i32, i32
  }
  func.func @transform_4(%arg0: i32) -> (i32, i32) {
    %c0_i32 = arith.constant 0 : i32
    %c0_i32_0 = arith.constant 0 : i32
    return %arg0, %c0_i32 : i32, i32
  }
}

</mosaic_0001>

<llo_original>
// kernel: tpu_custom_call.1
$region0: #{tpu_custom_call.1}
  #allocation0 [shape = 'u32[]', space=smem, size = 0x4, offset = 0x4, fixed_abs, tag = 'smem constant byte address 0x4 - core index']
  #allocation1 [shape = 'u32[72,128]{1,0:T(1,128)}', space=vmem, size = 0x9000, scoped, tag = 'internal scratch']
  %s0 = inlined_call_operand.hbm [shape: f32[1,16], index: 0, kind: input, shape index: {}]
  %s1 = inlined_call_operand.hbm [shape: f32[16,512], index: 1, kind: input, shape index: {}]
  %s2 = inlined_call_operand.hbm [shape: f32[1,512], index: 2, kind: input, shape index: {}]
  %s3 = inlined_call_operand.hbm [shape: f32[1,512], index: 3, kind: input, shape index: {}]
  %s4 = inlined_call_operand.hbm [shape: f32[1,512], index: 4, kind: output, shape index: {}]
  %s5 = sld [smem:[#allocation0]]
  $region42: #{tpu_custom_call.1} parent=0
    _
  %s7 = ssub.s32 1, %s5
  %s8 = scalar_select 0, %s7, %s5
  $region1: #{tpu_custom_call.1} parent=0
    #allocation2 [shape = 'u8[512]{0}', space=vmem, size = 0x400, scoped, tag = 'input window, operand 0, single buffered']
    #allocation3 [shape = 's32[1]{0}', space=sflag, size = 0x4, scoped, tag = 'scoped memory for tpu_custom_call.1']
    #allocation4 [shape = 's32[1]{0}', space=sflag, size = 0x4, scoped, tag = 'scoped memory for tpu_custom_call.1']
    #allocation5 [shape = 'u8[32768]{0}', space=vmem, size = 0x8000, scoped, tag = 'input window, operand 1, single buffered']
    #allocation6 [shape = 's32[1]{0}', space=sflag, size = 0x4, scoped, tag = 'scoped memory for tpu_custom_call.1']
    #allocation7 [shape = 'u8[2048]{0}', space=vmem, size = 0x800, scoped, tag = 'input window, operand 2, single buffered']
    #allocation8 [shape = 'u8[2048]{0}', space=vmem, size = 0x800, scoped, tag = 'input window, operand 3, single buffered']
    #allocation9 [shape = 's32[1]{0}', space=sflag, size = 0x4, scoped, tag = 'scoped memory for tpu_custom_call.1']
    #allocation10 [shape = 'u8[2048]{0}', space=vmem, size = 0x800, scoped, tag = 'output window, operand 0, single buffered']
    %9 = vsyncpa [#allocation3], 0
    %10 = vsyncpa [#allocation6], 0
    %11 = vsyncpa [#allocation9], 0
    %12 = vsyncpa [#allocation4], 0
    // Predicated region
    $region2: #{tpu_custom_call.1} parent=1 // pred_check
      _
    $region3: #{tpu_custom_call.1} parent=1 // pred_check_branch
      %14 = sbr.rel (0) target = $region5
    $region4: #{tpu_custom_call.1} parent=1 // pred_region
      %16 = vsyncadd [#allocation3], 0
      %s18 = sshll.u32 %s0, 4
      %s19 = int_to_ptr.hbm [resolvable:$true] %s18
      %s20 = sshll.u32 [#allocation2], 4
      %s21 = int_to_ptr.vmem [resolvable:$true] %s20
      %23 = dma.hbm_to_vmem [thread:$0]  %s19, 16, %s21, [#allocation3]
    $region5: #{tpu_custom_call.1} parent=1 // pred_fallthru
      _
    // Predicated region
    $region6: #{tpu_custom_call.1} parent=1 // pred_check
      _
    $region7: #{tpu_custom_call.1} parent=1 // pred_check_branch
      %25 = sbr.rel (0) target = $region9
    $region8: #{tpu_custom_call.1} parent=1 // pred_region
      %27 = vsyncadd [#allocation6], 0
      %s28 = sshll.u32 %s1, 4
      %s29 = int_to_ptr.hbm [resolvable:$true] %s28
      %s30 = sshll.u32 [#allocation5], 4
      %s31 = int_to_ptr.vmem [resolvable:$true] %s30
      %36 = dma.hbm_to_vmem [thread:$0]  %s29, 1024, %s31, [#allocation6], 512, 512, 32
    $region9: #{tpu_custom_call.1} parent=1 // pred_fallthru
      _
    // Predicated region
    $region10: #{tpu_custom_call.1} parent=1 // pred_check
      _
    $region11: #{tpu_custom_call.1} parent=1 // pred_check_branch
      %38 = sbr.rel (0) target = $region13
    $region12: #{tpu_custom_call.1} parent=1 // pred_region
      %40 = vsyncadd [#allocation6], 0
      %s42 = sshll.u32 %s2, 4
      %s43 = int_to_ptr.hbm [resolvable:$true] %s42
      %s44 = sshll.u32 [#allocation7], 4
      %s45 = int_to_ptr.vmem [resolvable:$true] %s44
      %47 = dma.hbm_to_vmem [thread:$0]  %s43, 64, %s45, [#allocation6]
    $region13: #{tpu_custom_call.1} parent=1 // pred_fallthru
      _
    // Predicated region
    $region14: #{tpu_custom_call.1} parent=1 // pred_check
      _
    $region15: #{tpu_custom_call.1} parent=1 // pred_check_branch
      %49 = sbr.rel (0) target = $region17
    $region16: #{tpu_custom_call.1} parent=1 // pred_region
      %51 = vsyncadd [#allocation9], 0
      %s53 = sshll.u32 %s3, 4
      %s54 = int_to_ptr.hbm [resolvable:$true] %s53
      %s55 = sshll.u32 [#allocation8], 4
      %s56 = int_to_ptr.vmem [resolvable:$true] %s55
      %58 = dma.hbm_to_vmem [thread:$0]  %s54, 64, %s56, [#allocation9]
    $region17: #{tpu_custom_call.1} parent=1 // pred_fallthru
      _
    // Predicated region
    $region18: #{tpu_custom_call.1} parent=1 // pred_check
      _
    $region19: #{tpu_custom_call.1} parent=1 // pred_check_branch
      %60 = sbr.rel (0) target = $region21
    $region20: #{tpu_custom_call.1} parent=1 // pred_region
      %62 = dma.done [#allocation3], 16
    $region21: #{tpu_custom_call.1} parent=1 // pred_fallthru
      _
    // Predicated region
    $region22: #{tpu_custom_call.1} parent=1 // pred_check
      _
    $region23: #{tpu_custom_call.1} parent=1 // pred_check_branch
      %64 = sbr.rel (0) target = $region25
    $region24: #{tpu_custom_call.1} parent=1 // pred_region
      %66 = dma.done [#allocation6], 1024
    $region25: #{tpu_custom_call.1} parent=1 // pred_fallthru
      _
    // Predicated region
    $region26: #{tpu_custom_call.1} parent=1 // pred_check
      _
    $region27: #{tpu_custom_call.1} parent=1 // pred_check_branch
      %68 = sbr.rel (0) target = $region29
    $region28: #{tpu_custom_call.1} parent=1 // pred_region
      %70 = dma.done [#allocation6], 64
    $region29: #{tpu_custom_call.1} parent=1 // pred_fallthru
      _
    // Predicated region
    $region30: #{tpu_custom_call.1} parent=1 // pred_check
      _
    $region31: #{tpu_custom_call.1} parent=1 // pred_check_branch
      %72 = sbr.rel (0) target = $region33
    $region32: #{tpu_custom_call.1} parent=1 // pred_region
      %74 = dma.done [#allocation9], 64
    $region33: #{tpu_custom_call.1} parent=1 // pred_fallthru
      _
    %v75 = vld [vmem:[#allocation2] sm:$0x1]
    %v76 = vadd.f32 %v75, 1e-05
    %v77 = vlog2.pop %v76
    %v78 = vmul.f32 %v77, 0.6931472
    %v79 = vld [vmem:[#allocation5] sm:$0xff]
    %v80 = vld [vmem:[#allocation5 + $0x8] sm:$0xff]
    %v81 = vld [vmem:[#allocation5 + $0x10] sm:$0xff]
    %v82 = vld [vmem:[#allocation5 + $0x18] sm:$0xff]
    %v83 = vld [vmem:[#allocation5 + $0x20] sm:$0xff]
    %v84 = vld [vmem:[#allocation5 + $0x28] sm:$0xff]
    %v85 = vld [vmem:[#allocation5 + $0x30] sm:$0xff]
    %v86 = vld [vmem:[#allocation5 + $0x38] sm:$0xff]
    %v87 = vld [vmem:[#allocation7] sm:$0xf]
    %v89 = vperm.slane %v87, 0
    %v90 = vperm.slane %v87, 1
    %v91 = vperm.slane %v87, 2
    %v92 = vperm.slane %v87, 3
    %vm97 = vcmask 130048
    %v99 = vsel %vm97, %v78, 0
    %101 = vmatpush.msra.mxu0 0.0
    %102 = vmatpush.msra.mxu0 0.0
    %103 = vmatpush.msra.mxu0 0.0
    %104 = vmatpush.msra.mxu0 0.0
    %105 = vmatpush.msra.mxu0 0.0
    %106 = vmatpush.msra.mxu0 0.0
    %107 = vmatpush.msra.mxu0 0.0
    %108 = vmatpush.msra.mxu0 0.0
    %109 = vmatpush.msra.mxu0 0.0
    %110 = vmatpush.msra.mxu0 0.0
    %111 = vmatpush.msra.mxu0 0.0
    %112 = vmatpush.msra.mxu0 0.0
    %113 = vmatpush.msra.mxu0 0.0
    %114 = vmatpush.msra.mxu0 0.0
    %v115 = vand.u32 %v83, 4294901760
    %116 = vmatpush.msra.mxu0 %v115
    %v117 = vand.u32 %v79, 4294901760
    %118 = vmatpush.msra.mxu0 %v117
    %v119 = vand.u32 %v99, 4294901760
    %v120 = vsub.f32 %v99, %v119
    %v121 = vand.u32 %v120, 4294901760
    %v122 = vsub.f32 %v120, %v121
    %v123 = vand.u32 %v122, 4294901760
    %124 = vmatmul.f32.gmra.mxu0 %v123
    %v125 = vpop.f32.mrf.mxu0
    %v126 = vadd.f32 %v89, %v125
    %127 = vdwg.mxu0
    %128 = vmatpush.msra.mxu0 0.0
    %129 = vmatpush.msra.mxu0 0.0
    %130 = vmatpush.msra.mxu0 0.0
    %131 = vmatpush.msra.mxu0 0.0
    %132 = vmatpush.msra.mxu0 0.0
    %133 = vmatpush.msra.mxu0 0.0
    %134 = vmatpush.msra.mxu0 0.0
    %135 = vmatpush.msra.mxu0 0.0
    %136 = vmatpush.msra.mxu0 0.0
    %137 = vmatpush.msra.mxu0 0.0
    %138 = vmatpush.msra.mxu0 0.0
    %139 = vmatpush.msra.mxu0 0.0
    %140 = vmatpush.msra.mxu0 0.0
    %141 = vmatpush.msra.mxu0 0.0
    %v142 = vand.u32 %v83, 4294901760
    %v143 = vsub.f32 %v83, %v142
    %v144 = vand.u32 %v143, 4294901760
    %v145 = vsub.f32 %v143, %v144
    %v146 = vand.u32 %v145, 4294901760
    %147 = vmatpush.msra.mxu0 %v146
    %v148 = vand.u32 %v79, 4294901760
    %v149 = vsub.f32 %v79, %v148
    %v150 = vand.u32 %v149, 4294901760
    %v151 = vsub.f32 %v149, %v150
    %v152 = vand.u32 %v151, 4294901760
    %153 = vmatpush.msra.mxu0 %v152
    %v154 = vand.u32 %v99, 4294901760
    %155 = vmatmul.f32.gmra.mxu0 %v154
    %v156 = vpop.f32.mrf.mxu0
    %v157 = vadd.f32 %v126, %v156
    %158 = vdwg.mxu0
    %159 = vmatpush.msra.mxu0 0.0
    %160 = vmatpush.msra.mxu0 0.0
    %161 = vmatpush.msra.mxu0 0.0
    %162 = vmatpush.msra.mxu0 0.0
    %163 = vmatpush.msra.mxu0 0.0
    %164 = vmatpush.msra.mxu0 0.0
    %165 = vmatpush.msra.mxu0 0.0
    %166 = vmatpush.msra.mxu0 0.0
    %167 = vmatpush.msra.mxu0 0.0
    %168 = vmatpush.msra.mxu0 0.0
    %169 = vmatpush.msra.mxu0 0.0
    %170 = vmatpush.msra.mxu0 0.0
    %171 = vmatpush.msra.mxu0 0.0
    %172 = vmatpush.msra.mxu0 0.0
    %v173 = vand.u32 %v83, 4294901760
    %v174 = vsub.f32 %v83, %v173
    %175 = vmatpush.msra.mxu0 %v174
    %v176 = vand.u32 %v79, 4294901760
    %v177 = vsub.f32 %v79, %v176
    %178 = vmatpush.msra.mxu0 %v177
    %v179 = vand.u32 %v99, 4294901760
    %v180 = vsub.f32 %v99, %v179
    %181 = vmatmul.f32.gmra.mxu0 %v180
    %v182 = vpop.f32.mrf.mxu0
    %v183 = vadd.f32 %v157, %v182
    %184 = vdwg.mxu0
    %185 = vmatpush.msra.mxu0 0.0
    %186 = vmatpush.msra.mxu0 0.0
    %187 = vmatpush.msra.mxu0 0.0
    %188 = vmatpush.msra.mxu0 0.0
    %189 = vmatpush.msra.mxu0 0.0
    %190 = vmatpush.msra.mxu0 0.0
    %191 = vmatpush.msra.mxu0 0.0
    %192 = vmatpush.msra.mxu0 0.0
    %193 = vmatpush.msra.mxu0 0.0
    %194 = vmatpush.msra.mxu0 0.0
    %195 = vmatpush.msra.mxu0 0.0
    %196 = vmatpush.msra.mxu0 0.0
    %197 = vmatpush.msra.mxu0 0.0
    %198 = vmatpush.msra.mxu0 0.0
    %v199 = vand.u32 %v83, 4294901760
    %200 = vmatpush.msra.mxu0 %v199
    %v201 = vand.u32 %v79, 4294901760
    %202 = vmatpush.msra.mxu0 %v201
    %v203 = vand.u32 %v99, 4294901760
    %v204 = vsub.f32 %v99, %v203
    %v205 = vand.u32 %v204, 4294901760
    %206 = vmatmul.f32.gmra.mxu0 %v205
    %v207 = vpop.f32.mrf.mxu0
    %v208 = vadd.f32 %v183, %v207
    %209 = vdwg.mxu0
    %210 = vmatpush.msra.mxu0 0.0
    %211 = vmatpush.msra.mxu0 0.0
    %212 = vmatpush.msra.mxu0 0.0
    %213 = vmatpush.msra.mxu0 0.0
    %214 = vmatpush.msra.mxu0 0.0
    %215 = vmatpush.msra.mxu0 0.0
    %216 = vmatpush.msra.mxu0 0.0
    %217 = vmatpush.msra.mxu0 0.0
    %218 = vmatpush.msra.mxu0 0.0
    %219 = vmatpush.msra.mxu0 0.0
    %220 = vmatpush.msra.mxu0 0.0
    %221 = vmatpush.msra.mxu0 0.0
    %222 = vmatpush.msra.mxu0 0.0
    %223 = vmatpush.msra.mxu0 0.0
    %v224 = vand.u32 %v83, 4294901760
    %v225 = vsub.f32 %v83, %v224
    %v226 = vand.u32 %v225, 4294901760
    %227 = vmatpush.msra.mxu0 %v226
    %v228 = vand.u32 %v79, 4294901760
    %v229 = vsub.f32 %v79, %v228
    %v230 = vand.u32 %v229, 4294901760
    %231 = vmatpush.msra.mxu0 %v230
    %v232 = vand.u32 %v99, 4294901760
    %233 = vmatmul.f32.gmra.mxu0 %v232
    %v234 = vpop.f32.mrf.mxu0
    %v235 = vadd.f32 %v208, %v234
    %236 = vdwg.mxu0
    %237 = vmatpush.msra.mxu0 0.0
    %238 = vmatpush.msra.mxu0 0.0
    %239 = vmatpush.msra.mxu0 0.0
    %240 = vmatpush.msra.mxu0 0.0
    %241 = vmatpush.msra.mxu0 0.0
    %242 = vmatpush.msra.mxu0 0.0
    %243 = vmatpush.msra.mxu0 0.0
    %244 = vmatpush.msra.mxu0 0.0
    %245 = vmatpush.msra.mxu0 0.0
    %246 = vmatpush.msra.mxu0 0.0
    %247 = vmatpush.msra.mxu0 0.0
    %248 = vmatpush.msra.mxu0 0.0
    %249 = vmatpush.msra.mxu0 0.0
    %250 = vmatpush.msra.mxu0 0.0
    %v251 = vand.u32 %v83, 4294901760
    %252 = vmatpush.msra.mxu0 %v251
    %v253 = vand.u32 %v79, 4294901760
    %254 = vmatpush.msra.mxu0 %v253
    %v255 = vand.u32 %v99, 4294901760
    %256 = vmatmul.f32.gmra.mxu0 %v255
    %v257 = vpop.f32.mrf.mxu0
    %v258 = vadd.f32 %v235, %v257
    %259 = vdwg.mxu0
    %260 = vmatpush.msra.mxu0 0.0
    %261 = vmatpush.msra.mxu0 0.0
    %262 = vmatpush.msra.mxu0 0.0
    %263 = vmatpush.msra.mxu0 0.0
    %264 = vmatpush.msra.mxu0 0.0
    %265 = vmatpush.msra.mxu0 0.0
    %266 = vmatpush.msra.mxu0 0.0
    %267 = vmatpush.msra.mxu0 0.0
    %268 = vmatpush.msra.mxu0 0.0
    %269 = vmatpush.msra.mxu0 0.0
    %270 = vmatpush.msra.mxu0 0.0
    %271 = vmatpush.msra.mxu0 0.0
    %272 = vmatpush.msra.mxu0 0.0
    %273 = vmatpush.msra.mxu0 0.0
    %v274 = vand.u32 %v84, 4294901760
    %275 = vmatpush.msra.mxu0 %v274
    %v276 = vand.u32 %v80, 4294901760
    %277 = vmatpush.msra.mxu0 %v276
    %v278 = vand.u32 %v99, 4294901760
    %v279 = vsub.f32 %v99, %v278
    %v280 = vand.u32 %v279, 4294901760
    %v281 = vsub.f32 %v279, %v280
    %v282 = vand.u32 %v281, 4294901760
    %283 = vmatmul.f32.gmra.mxu0 %v282
    %v284 = vpop.f32.mrf.mxu0
    %v285 = vadd.f32 %v90, %v284
    %286 = vdwg.mxu0
    %287 = vmatpush.msra.mxu0 0.0
    %288 = vmatpush.msra.mxu0 0.0
    %289 = vmatpush.msra.mxu0 0.0
    %290 = vmatpush.msra.mxu0 0.0
    %291 = vmatpush.msra.mxu0 0.0
    %292 = vmatpush.msra.mxu0 0.0
    %293 = vmatpush.msra.mxu0 0.0
    %294 = vmatpush.msra.mxu0 0.0
    %295 = vmatpush.msra.mxu0 0.0
    %296 = vmatpush.msra.mxu0 0.0
    %297 = vmatpush.msra.mxu0 0.0
    %298 = vmatpush.msra.mxu0 0.0
    %299 = vmatpush.msra.mxu0 0.0
    %300 = vmatpush.msra.mxu0 0.0
    %v301 = vand.u32 %v84, 4294901760
    %v302 = vsub.f32 %v84, %v301
    %v303 = vand.u32 %v302, 4294901760
    %v304 = vsub.f32 %v302, %v303
    %v305 = vand.u32 %v304, 4294901760
    %306 = vmatpush.msra.mxu0 %v305
    %v307 = vand.u32 %v80, 4294901760
    %v308 = vsub.f32 %v80, %v307
    %v309 = vand.u32 %v308, 4294901760
    %v310 = vsub.f32 %v308, %v309
    %v311 = vand.u32 %v310, 4294901760
    %312 = vmatpush.msra.mxu0 %v311
    %v313 = vand.u32 %v99, 4294901760
    %314 = vmatmul.f32.gmra.mxu0 %v313
    %v315 = vpop.f32.mrf.mxu0
    %v316 = vadd.f32 %v285, %v315
    %317 = vdwg.mxu0
    %318 = vmatpush.msra.mxu0 0.0
    %319 = vmatpush.msra.mxu0 0.0
    %320 = vmatpush.msra.mxu0 0.0
    %321 = vmatpush.msra.mxu0 0.0
    %322 = vmatpush.msra.mxu0 0.0
    %323 = vmatpush.msra.mxu0 0.0
    %324 = vmatpush.msra.mxu0 0.0
    %325 = vmatpush.msra.mxu0 0.0
    %326 = vmatpush.msra.mxu0 0.0
    %327 = vmatpush.msra.mxu0 0.0
    %328 = vmatpush.msra.mxu0 0.0
    %329 = vmatpush.msra.mxu0 0.0
    %330 = vmatpush.msra.mxu0 0.0
    %331 = vmatpush.msra.mxu0 0.0
    %v332 = vand.u32 %v84, 4294901760
    %v333 = vsub.f32 %v84, %v332
    %334 = vmatpush.msra.mxu0 %v333
    %v335 = vand.u32 %v80, 4294901760
    %v336 = vsub.f32 %v80, %v335
    %337 = vmatpush.msra.mxu0 %v336
    %v338 = vand.u32 %v99, 4294901760
    %v339 = vsub.f32 %v99, %v338
    %340 = vmatmul.f32.gmra.mxu0 %v339
    %v341 = vpop.f32.mrf.mxu0
    %v342 = vadd.f32 %v316, %v341
    %343 = vdwg.mxu0
    %344 = vmatpush.msra.mxu0 0.0
    %345 = vmatpush.msra.mxu0 0.0
    %346 = vmatpush.msra.mxu0 0.0
    %347 = vmatpush.msra.mxu0 0.0
    %348 = vmatpush.msra.mxu0 0.0
    %349 = vmatpush.msra.mxu0 0.0
    %350 = vmatpush.msra.mxu0 0.0
    %351 = vmatpush.msra.mxu0 0.0
    %352 = vmatpush.msra.mxu0 0.0
    %353 = vmatpush.msra.mxu0 0.0
    %354 = vmatpush.msra.mxu0 0.0
    %355 = vmatpush.msra.mxu0 0.0
    %356 = vmatpush.msra.mxu0 0.0
    %357 = vmatpush.msra.mxu0 0.0
    %v358 = vand.u32 %v84, 4294901760
    %359 = vmatpush.msra.mxu0 %v358
    %v360 = vand.u32 %v80, 4294901760
    %361 = vmatpush.msra.mxu0 %v360
    %v362 = vand.u32 %v99, 4294901760
    %v363 = vsub.f32 %v99, %v362
    %v364 = vand.u32 %v363, 4294901760
    %365 = vmatmul.f32.gmra.mxu0 %v364
    %v366 = vpop.f32.mrf.mxu0
    %v367 = vadd.f32 %v342, %v366
    %368 = vdwg.mxu0
    %369 = vmatpush.msra.mxu0 0.0
    %370 = vmatpush.msra.mxu0 0.0
    %371 = vmatpush.msra.mxu0 0.0
    %372 = vmatpush.msra.mxu0 0.0
    %373 = vmatpush.msra.mxu0 0.0
    %374 = vmatpush.msra.mxu0 0.0
    %375 = vmatpush.msra.mxu0 0.0
    %376 = vmatpush.msra.mxu0 0.0
    %377 = vmatpush.msra.mxu0 0.0
    %378 = vmatpush.msra.mxu0 0.0
    %379 = vmatpush.msra.mxu0 0.0
    %380 = vmatpush.msra.mxu0 0.0
    %381 = vmatpush.msra.mxu0 0.0
    %382 = vmatpush.msra.mxu0 0.0
    %v383 = vand.u32 %v84, 4294901760
    %v384 = vsub.f32 %v84, %v383
    %v385 = vand.u32 %v384, 4294901760
    %386 = vmatpush.msra.mxu0 %v385
    %v387 = vand.u32 %v80, 4294901760
    %v388 = vsub.f32 %v80, %v387
    %v389 = vand.u32 %v388, 4294901760
    %390 = vmatpush.msra.mxu0 %v389
    %v391 = vand.u32 %v99, 4294901760
    %392 = vmatmul.f32.gmra.mxu0 %v391
    %v393 = vpop.f32.mrf.mxu0
    %v394 = vadd.f32 %v367, %v393
    %395 = vdwg.mxu0
    %396 = vmatpush.msra.mxu0 0.0
    %397 = vmatpush.msra.mxu0 0.0
    %398 = vmatpush.msra.mxu0 0.0
    %399 = vmatpush.msra.mxu0 0.0
    %400 = vmatpush.msra.mxu0 0.0
    %401 = vmatpush.msra.mxu0 0.0
    %402 = vmatpush.msra.mxu0 0.0
    %403 = vmatpush.msra.mxu0 0.0
    %404 = vmatpush.msra.mxu0 0.0
    %405 = vmatpush.msra.mxu0 0.0
    %406 = vmatpush.msra.mxu0 0.0
    %407 = vmatpush.msra.mxu0 0.0
    %408 = vmatpush.msra.mxu0 0.0
    %409 = vmatpush.msra.mxu0 0.0
    %v410 = vand.u32 %v84, 4294901760
    %411 = vmatpush.msra.mxu0 %v410
    %v412 = vand.u32 %v80, 4294901760
    %413 = vmatpush.msra.mxu0 %v412
    %v414 = vand.u32 %v99, 4294901760
    %415 = vmatmul.f32.gmra.mxu0 %v414
    %v416 = vpop.f32.mrf.mxu0
    %v417 = vadd.f32 %v394, %v416
    %418 = vdwg.mxu0
    %419 = vmatpush.msra.mxu0 0.0
    %420 = vmatpush.msra.mxu0 0.0
    %421 = vmatpush.msra.mxu0 0.0
    %422 = vmatpush.msra.mxu0 0.0
    %423 = vmatpush.msra.mxu0 0.0
    %424 = vmatpush.msra.mxu0 0.0
    %425 = vmatpush.msra.mxu0 0.0
    %426 = vmatpush.msra.mxu0 0.0
    %427 = vmatpush.msra.mxu0 0.0
    %428 = vmatpush.msra.mxu0 0.0
    %429 = vmatpush.msra.mxu0 0.0
    %430 = vmatpush.msra.mxu0 0.0
    %431 = vmatpush.msra.mxu0 0.0
    %432 = vmatpush.msra.mxu0 0.0
    %v433 = vand.u32 %v85, 4294901760
    %434 = vmatpush.msra.mxu0 %v433
    %v435 = vand.u32 %v81, 4294901760
    %436 = vmatpush.msra.mxu0 %v435
    %v437 = vand.u32 %v99, 4294901760
    %v438 = vsub.f32 %v99, %v437
    %v439 = vand.u32 %v438, 4294901760
    %v440 = vsub.f32 %v438, %v439
    %v441 = vand.u32 %v440, 4294901760
    %442 = vmatmul.f32.gmra.mxu0 %v441
    %v443 = vpop.f32.mrf.mxu0
    %v444 = vadd.f32 %v91, %v443
    %445 = vdwg.mxu0
    %446 = vmatpush.msra.mxu0 0.0
    %447 = vmatpush.msra.mxu0 0.0
    %448 = vmatpush.msra.mxu0 0.0
    %449 = vmatpush.msra.mxu0 0.0
    %450 = vmatpush.msra.mxu0 0.0
    %451 = vmatpush.msra.mxu0 0.0
    %452 = vmatpush.msra.mxu0 0.0
    %453 = vmatpush.msra.mxu0 0.0
    %454 = vmatpush.msra.mxu0 0.0
    %455 = vmatpush.msra.mxu0 0.0
    %456 = vmatpush.msra.mxu0 0.0
    %457 = vmatpush.msra.mxu0 0.0
    %458 = vmatpush.msra.mxu0 0.0
    %459 = vmatpush.msra.mxu0 0.0
    %v460 = vand.u32 %v85, 4294901760
    %v461 = vsub.f32 %v85, %v460
    %v462 = vand.u32 %v461, 4294901760
    %v463 = vsub.f32 %v461, %v462
    %v464 = vand.u32 %v463, 4294901760
    %465 = vmatpush.msra.mxu0 %v464
    %v466 = vand.u32 %v81, 4294901760
    %v467 = vsub.f32 %v81, %v466
    %v468 = vand.u32 %v467, 4294901760
    %v469 = vsub.f32 %v467, %v468
    %v470 = vand.u32 %v469, 4294901760
    %471 = vmatpush.msra.mxu0 %v470
    %v472 = vand.u32 %v99, 4294901760
    %473 = vmatmul.f32.gmra.mxu0 %v472
    %v474 = vpop.f32.mrf.mxu0
    %v475 = vadd.f32 %v444, %v474
    %476 = vdwg.mxu0
    %477 = vmatpush.msra.mxu0 0.0
    %478 = vmatpush.msra.mxu0 0.0
    %479 = vmatpush.msra.mxu0 0.0
    %480 = vmatpush.msra.mxu0 0.0
    %481 = vmatpush.msra.mxu0 0.0
    %482 = vmatpush.msra.mxu0 0.0
    %483 = vmatpush.msra.mxu0 0.0
    %484 = vmatpush.msra.mxu0 0.0
    %485 = vmatpush.msra.mxu0 0.0
    %486 = vmatpush.msra.mxu0 0.0
    %487 = vmatpush.msra.mxu0 0.0
    %488 = vmatpush.msra.mxu0 0.0
    %489 = vmatpush.msra.mxu0 0.0
    %490 = vmatpush.msra.mxu0 0.0
    %v491 = vand.u32 %v85, 4294901760
    %v492 = vsub.f32 %v85, %v491
    %493 = vmatpush.msra.mxu0 %v492
    %v494 = vand.u32 %v81, 4294901760
    %v495 = vsub.f32 %v81, %v494
    %496 = vmatpush.msra.mxu0 %v495
    %v497 = vand.u32 %v99, 4294901760
    %v498 = vsub.f32 %v99, %v497
    %499 = vmatmul.f32.gmra.mxu0 %v498
    %v500 = vpop.f32.mrf.mxu0
    %v501 = vadd.f32 %v475, %v500
    %502 = vdwg.mxu0
    %503 = vmatpush.msra.mxu0 0.0
    %504 = vmatpush.msra.mxu0 0.0
    %505 = vmatpush.msra.mxu0 0.0
    %506 = vmatpush.msra.mxu0 0.0
    %507 = vmatpush.msra.mxu0 0.0
    %508 = vmatpush.msra.mxu0 0.0
    %509 = vmatpush.msra.mxu0 0.0
    %510 = vmatpush.msra.mxu0 0.0
    %511 = vmatpush.msra.mxu0 0.0
    %512 = vmatpush.msra.mxu0 0.0
    %513 = vmatpush.msra.mxu0 0.0
    %514 = vmatpush.msra.mxu0 0.0
    %515 = vmatpush.msra.mxu0 0.0
    %516 = vmatpush.msra.mxu0 0.0
    %v517 = vand.u32 %v85, 4294901760
    %518 = vmatpush.msra.mxu0 %v517
    %v519 = vand.u32 %v81, 4294901760
    %520 = vmatpush.msra.mxu0 %v519
    %v521 = vand.u32 %v99, 4294901760
    %v522 = vsub.f32 %v99, %v521
    %v523 = vand.u32 %v522, 4294901760
    %524 = vmatmul.f32.gmra.mxu0 %v523
    %v525 = vpop.f32.mrf.mxu0
    %v526 = vadd.f32 %v501, %v525
    %527 = vdwg.mxu0
    %528 = vmatpush.msra.mxu0 0.0
    %529 = vmatpush.msra.mxu0 0.0
    %530 = vmatpush.msra.mxu0 0.0
    %531 = vmatpush.msra.mxu0 0.0
    %532 = vmatpush.msra.mxu0 0.0
    %533 = vmatpush.msra.mxu0 0.0
    %534 = vmatpush.msra.mxu0 0.0
    %535 = vmatpush.msra.mxu0 0.0
    %536 = vmatpush.msra.mxu0 0.0
    %537 = vmatpush.msra.mxu0 0.0
    %538 = vmatpush.msra.mxu0 0.0
    %539 = vmatpush.msra.mxu0 0.0
    %540 = vmatpush.msra.mxu0 0.0
    %541 = vmatpush.msra.mxu0 0.0
    %v542 = vand.u32 %v85, 4294901760
    %v543 = vsub.f32 %v85, %v542
    %v544 = vand.u32 %v543, 4294901760
    %545 = vmatpush.msra.mxu0 %v544
    %v546 = vand.u32 %v81, 4294901760
    %v547 = vsub.f32 %v81, %v546
    %v548 = vand.u32 %v547, 4294901760
    %549 = vmatpush.msra.mxu0 %v548
    %v550 = vand.u32 %v99, 4294901760
    %551 = vmatmul.f32.gmra.mxu0 %v550
    %v552 = vpop.f32.mrf.mxu0
    %v553 = vadd.f32 %v526, %v552
    %554 = vdwg.mxu0
    %555 = vmatpush.msra.mxu0 0.0
    %556 = vmatpush.msra.mxu0 0.0
    %557 = vmatpush.msra.mxu0 0.0
    %558 = vmatpush.msra.mxu0 0.0
    %559 = vmatpush.msra.mxu0 0.0
    %560 = vmatpush.msra.mxu0 0.0
    %561 = vmatpush.msra.mxu0 0.0
    %562 = vmatpush.msra.mxu0 0.0
    %563 = vmatpush.msra.mxu0 0.0
    %564 = vmatpush.msra.mxu0 0.0
    %565 = vmatpush.msra.mxu0 0.0
    %566 = vmatpush.msra.mxu0 0.0
    %567 = vmatpush.msra.mxu0 0.0
    %568 = vmatpush.msra.mxu0 0.0
    %v569 = vand.u32 %v85, 4294901760
    %570 = vmatpush.msra.mxu0 %v569
    %v571 = vand.u32 %v81, 4294901760
    %572 = vmatpush.msra.mxu0 %v571
    %v573 = vand.u32 %v99, 4294901760
    %574 = vmatmul.f32.gmra.mxu0 %v573
    %v575 = vpop.f32.mrf.mxu0
    %v576 = vadd.f32 %v553, %v575
    %577 = vdwg.mxu0
    %578 = vmatpush.msra.mxu0 0.0
    %579 = vmatpush.msra.mxu0 0.0
    %580 = vmatpush.msra.mxu0 0.0
    %581 = vmatpush.msra.mxu0 0.0
    %582 = vmatpush.msra.mxu0 0.0
    %583 = vmatpush.msra.mxu0 0.0
    %584 = vmatpush.msra.mxu0 0.0
    %585 = vmatpush.msra.mxu0 0.0
    %586 = vmatpush.msra.mxu0 0.0
    %587 = vmatpush.msra.mxu0 0.0
    %588 = vmatpush.msra.mxu0 0.0
    %589 = vmatpush.msra.mxu0 0.0
    %590 = vmatpush.msra.mxu0 0.0
    %591 = vmatpush.msra.mxu0 0.0
    %v592 = vand.u32 %v86, 4294901760
    %593 = vmatpush.msra.mxu0 %v592
    %v594 = vand.u32 %v82, 4294901760
    %595 = vmatpush.msra.mxu0 %v594
    %v596 = vand.u32 %v99, 4294901760
    %v597 = vsub.f32 %v99, %v596
    %v598 = vand.u32 %v597, 4294901760
    %v599 = vsub.f32 %v597, %v598
    %v600 = vand.u32 %v599, 4294901760
    %601 = vmatmul.f32.gmra.mxu0 %v600
    %v602 = vpop.f32.mrf.mxu0
    %v603 = vadd.f32 %v92, %v602
    %604 = vdwg.mxu0
    %605 = vmatpush.msra.mxu0 0.0
    %606 = vmatpush.msra.mxu0 0.0
    %607 = vmatpush.msra.mxu0 0.0
    %608 = vmatpush.msra.mxu0 0.0
    %609 = vmatpush.msra.mxu0 0.0
    %610 = vmatpush.msra.mxu0 0.0
    %611 = vmatpush.msra.mxu0 0.0
    %612 = vmatpush.msra.mxu0 0.0
    %613 = vmatpush.msra.mxu0 0.0
    %614 = vmatpush.msra.mxu0 0.0
    %615 = vmatpush.msra.mxu0 0.0
    %616 = vmatpush.msra.mxu0 0.0
    %617 = vmatpush.msra.mxu0 0.0
    %618 = vmatpush.msra.mxu0 0.0
    %v619 = vand.u32 %v86, 4294901760
    %v620 = vsub.f32 %v86, %v619
    %v621 = vand.u32 %v620, 4294901760
    %v622 = vsub.f32 %v620, %v621
    %v623 = vand.u32 %v622, 4294901760
    %624 = vmatpush.msra.mxu0 %v623
    %v625 = vand.u32 %v82, 4294901760
    %v626 = vsub.f32 %v82, %v625
    %v627 = vand.u32 %v626, 4294901760
    %v628 = vsub.f32 %v626, %v627
    %v629 = vand.u32 %v628, 4294901760
    %630 = vmatpush.msra.mxu0 %v629
    %v631 = vand.u32 %v99, 4294901760
    %632 = vmatmul.f32.gmra.mxu0 %v631
    %v633 = vpop.f32.mrf.mxu0
    %v634 = vadd.f32 %v603, %v633
    %635 = vdwg.mxu0
    %636 = vmatpush.msra.mxu0 0.0
    %637 = vmatpush.msra.mxu0 0.0
    %638 = vmatpush.msra.mxu0 0.0
    %639 = vmatpush.msra.mxu0 0.0
    %640 = vmatpush.msra.mxu0 0.0
    %641 = vmatpush.msra.mxu0 0.0
    %642 = vmatpush.msra.mxu0 0.0
    %643 = vmatpush.msra.mxu0 0.0
    %644 = vmatpush.msra.mxu0 0.0
    %645 = vmatpush.msra.mxu0 0.0
    %646 = vmatpush.msra.mxu0 0.0
    %647 = vmatpush.msra.mxu0 0.0
    %648 = vmatpush.msra.mxu0 0.0
    %649 = vmatpush.msra.mxu0 0.0
    %v650 = vand.u32 %v86, 4294901760
    %v651 = vsub.f32 %v86, %v650
    %652 = vmatpush.msra.mxu0 %v651
    %v653 = vand.u32 %v82, 4294901760
    %v654 = vsub.f32 %v82, %v653
    %655 = vmatpush.msra.mxu0 %v654
    %v656 = vand.u32 %v99, 4294901760
    %v657 = vsub.f32 %v99, %v656
    %658 = vmatmul.f32.gmra.mxu0 %v657
    %v659 = vpop.f32.mrf.mxu0
    %v660 = vadd.f32 %v634, %v659
    %661 = vdwg.mxu0
    %662 = vmatpush.msra.mxu0 0.0
    %663 = vmatpush.msra.mxu0 0.0
    %664 = vmatpush.msra.mxu0 0.0
    %665 = vmatpush.msra.mxu0 0.0
    %666 = vmatpush.msra.mxu0 0.0
    %667 = vmatpush.msra.mxu0 0.0
    %668 = vmatpush.msra.mxu0 0.0
    %669 = vmatpush.msra.mxu0 0.0
    %670 = vmatpush.msra.mxu0 0.0
    %671 = vmatpush.msra.mxu0 0.0
    %672 = vmatpush.msra.mxu0 0.0
    %673 = vmatpush.msra.mxu0 0.0
    %674 = vmatpush.msra.mxu0 0.0
    %675 = vmatpush.msra.mxu0 0.0
    %v676 = vand.u32 %v86, 4294901760
    %677 = vmatpush.msra.mxu0 %v676
    %v678 = vand.u32 %v82, 4294901760
    %679 = vmatpush.msra.mxu0 %v678
    %v680 = vand.u32 %v99, 4294901760
    %v681 = vsub.f32 %v99, %v680
    %v682 = vand.u32 %v681, 4294901760
    %683 = vmatmul.f32.gmra.mxu0 %v682
    %v684 = vpop.f32.mrf.mxu0
    %v685 = vadd.f32 %v660, %v684
    %686 = vdwg.mxu0
    %687 = vmatpush.msra.mxu0 0.0
    %688 = vmatpush.msra.mxu0 0.0
    %689 = vmatpush.msra.mxu0 0.0
    %690 = vmatpush.msra.mxu0 0.0
    %691 = vmatpush.msra.mxu0 0.0
    %692 = vmatpush.msra.mxu0 0.0
    %693 = vmatpush.msra.mxu0 0.0
    %694 = vmatpush.msra.mxu0 0.0
    %695 = vmatpush.msra.mxu0 0.0
    %696 = vmatpush.msra.mxu0 0.0
    %697 = vmatpush.msra.mxu0 0.0
    %698 = vmatpush.msra.mxu0 0.0
    %699 = vmatpush.msra.mxu0 0.0
    %700 = vmatpush.msra.mxu0 0.0
    %v701 = vand.u32 %v86, 4294901760
    %v702 = vsub.f32 %v86, %v701
    %v703 = vand.u32 %v702, 4294901760
    %704 = vmatpush.msra.mxu0 %v703
    %v705 = vand.u32 %v82, 4294901760
    %v706 = vsub.f32 %v82, %v705
    %v707 = vand.u32 %v706, 4294901760
    %708 = vmatpush.msra.mxu0 %v707
    %v709 = vand.u32 %v99, 4294901760
    %710 = vmatmul.f32.gmra.mxu0 %v709
    %v711 = vpop.f32.mrf.mxu0
    %v712 = vadd.f32 %v685, %v711
    %713 = vdwg.mxu0
    %714 = vmatpush.msra.mxu0 0.0
    %715 = vmatpush.msra.mxu0 0.0
    %716 = vmatpush.msra.mxu0 0.0
    %717 = vmatpush.msra.mxu0 0.0
    %718 = vmatpush.msra.mxu0 0.0
    %719 = vmatpush.msra.mxu0 0.0
    %720 = vmatpush.msra.mxu0 0.0
    %721 = vmatpush.msra.mxu0 0.0
    %722 = vmatpush.msra.mxu0 0.0
    %723 = vmatpush.msra.mxu0 0.0
    %724 = vmatpush.msra.mxu0 0.0
    %725 = vmatpush.msra.mxu0 0.0
    %726 = vmatpush.msra.mxu0 0.0
    %727 = vmatpush.msra.mxu0 0.0
    %v728 = vand.u32 %v86, 4294901760
    %729 = vmatpush.msra.mxu0 %v728
    %v730 = vand.u32 %v82, 4294901760
    %731 = vmatpush.msra.mxu0 %v730
    %v732 = vand.u32 %v99, 4294901760
    %733 = vmatmul.f32.gmra.mxu0 %v732
    %v734 = vpop.f32.mrf.mxu0
    %v735 = vadd.f32 %v712, %v734
    %736 = vdwg.mxu0
    %v737 = vld [vmem:[#allocation8] sm:$0xf]
    %vm738 = vcmp.ne.f32.partialorder %v737, 0.0
    %v739 = vand.u32 2147483647, %v258
    %vm740 = vcmp.le.f32.partialorder %v739, 0.7853982
    %vm741 = vcmp.lt.s32.totalorder %v258, 0
    %v742 = vand.u32 %v258, 2139095040
    %v743 = vshrl.u32 %v742, 23
    %v744 = vsub.s32 %v743, 127
    %v745 = vand.u32 2147483647, %v258
    %v746 = vand.u32 %v745, 8388607
    %v747 = vor.u32 %v746, 8388608
    %v748 = vsub.s32 0, %v747
    %v749 = vadd.s32 %v744, 1
    %vm750 = vcmp.gt.s32.totalorder %v749, 0
    %v751 = vsel %vm750, %v749, 0
    %v752 = vshrl.u32 %v751, 5
    %v753 = vand.u32 %v751, 31
    %v754 = vsub.s32 32, %v753
    %v755 = vshrl.u32 683565275, %v754
    %v756 = vshll.u32 683565275, %v753
    %v757 = vshrl.u32 2475754826, %v754
    %v758 = vor.u32 %v756, %v757
    %v759 = vshll.u32 2475754826, %v753
    %v760 = vshrl.u32 2131351028, %v754
    %v761 = vor.u32 %v759, %v760
    %v762 = vshll.u32 2131351028, %v753
    %v763 = vshrl.u32 2102212464, %v754
    %v764 = vor.u32 %v762, %v763
    %v765 = vshll.u32 2102212464, %v753
    %v766 = vshrl.u32 920167782, %v754
    %v767 = vor.u32 %v765, %v766
    %v768 = vshll.u32 920167782, %v753
    %v769 = vshrl.u32 1326507024, %v754
    %v770 = vor.u32 %v768, %v769
    %vm771 = vcmp.lt.s32.totalorder %v752, 1
    %vm772 = vcmp.lt.s32.totalorder %v752, 2
    %vm773 = vcmp.lt.s32.totalorder %v752, 3
    %vm774 = vcmp.lt.s32.totalorder %v752, 4
    %v775 = vsel %vm771, %v755, %v758
    %v776 = vsel %vm774, %v764, 2102212464
    %v777 = vsel %vm773, %v761, %v776
    %v778 = vsel %vm772, %v775, %v777
    %v779 = vsel %vm771, %v758, %v761
    %v780 = vsel %vm774, %v767, 920167782
    %v781 = vsel %vm773, %v764, %v780
    %v782 = vsel %vm772, %v779, %v781
    %v783 = vsel %vm771, %v761, %v764
    %v784 = vsel %vm774, %v770, 1326507024
    %v785 = vsel %vm773, %v767, %v784
    %v786 = vsel %vm772, %v783, %v785
    %v787 = vshll.u32 %v747, 8
    %v788 = vand.u32 %v787, 65535
    %v789 = vshrl.u32 %v787, 16
    %v790 = vand.u32 %v786, 65535
    %v791 = vshrl.u32 %v786, 16
    %v792 = vmul.u32 %v788, %v790
    %v793 = vmul.u32 %v788, %v791
    %v794 = vmul.u32 %v789, %v790
    %v795 = vmul.u32 %v789, %v791
    %v796 = vshll.u32 %v793, 16
    %v797 = vshrl.u32 %v793, 16
    %v798 = vshll.u32 %v794, 16
    %v799 = vshrl.u32 %v794, 16
    %vm800 = vc.u32 %v792, %v796
    %v801 = vsel %vm800, 1, 0
    %v802 = vadd.s32 %v792, %v796
    %v803 = vadd.s32 %v795, %v801
    %vm804 = vc.u32 %v802, %v798
    %v805 = vsel %vm804, 1, 0
    %v806 = vadd.s32 %v802, %v798
    %v807 = vadd.s32 %v803, %v805
    %v808 = vadd.s32 %v807, %v797
    %v809 = vadd.s32 %v808, %v799
    %v810 = vand.u32 %v787, 65535
    %v811 = vshrl.u32 %v787, 16
    %v812 = vand.u32 %v782, 65535
    %v813 = vshrl.u32 %v782, 16
    %v814 = vmul.u32 %v810, %v812
    %v815 = vmul.u32 %v810, %v813
    %v816 = vmul.u32 %v811, %v812
    %v817 = vmul.u32 %v811, %v813
    %v818 = vshll.u32 %v815, 16
    %v819 = vshrl.u32 %v815, 16
    %v820 = vshll.u32 %v816, 16
    %v821 = vshrl.u32 %v816, 16
    %vm822 = vc.u32 %v814, %v818
    %v823 = vsel %vm822, 1, 0
    %v824 = vadd.s32 %v814, %v818
    %v825 = vadd.s32 %v817, %v823
    %vm826 = vc.u32 %v824, %v820
    %v827 = vsel %vm826, 1, 0
    %v828 = vadd.s32 %v824, %v820
    %v829 = vadd.s32 %v825, %v827
    %v830 = vadd.s32 %v829, %v819
    %v831 = vadd.s32 %v830, %v821
    %v832 = vmul.u32 %v787, %v778
    %v833 = vadd.s32 %v809, %v828
    %vm834 = vc.u32 %v809, %v828
    %v835 = vadd.s32 %v831, 1
    %v836 = vsel %vm834, %v835, %v831
    %v837 = vadd.s32 %v832, %v836
    %v838 = vadd.s32 %v837, 536870912
    %v839 = vshrl.u32 %v838, 30
    %v840 = vshll.u32 %v839, 30
    %v841 = vsub.s32 %v837, %v840
    %vm842 = vcmp.lt.s32.totalorder %v841, 0
    %v843 = vsub.s32 0, %v841
    %v844 = vsel %vm842, %v843, %v841
    %v845 = vclz %v844
    %v846 = vsub.s32 %v845, 2
    %vm847 = vcmp.gt.s32.totalorder 0, %v846
    %v848 = vsel %vm847, 0, %v846
    %v849 = vsub.s32 32, %v848
    %v850 = vshll.u32 %v841, %v848
    %v851 = vshrl.u32 %v833, %v849
    %v852 = vor.u32 %v850, %v851
    %v853 = vsub.s32 4294967266, %v848
    %v854 = vadd.s32 %v853, 127
    %v855 = vshll.u32 %v854, 23
    %v856 = vor.u32 4788187, %v855
    %v857 = vand.u32 2147483647, %v856
    %v859 = vcvt.s32.f32 %v852
    %v860 = vmul.f32 %v859, %v857
    %v861 = vxor.u32 %v860, 2147483648
    %v862 = vsel %vm741, %v861, %v860
    %v863 = vsub.s32 4, %v839
    %v864 = vsel %vm741, %v863, %v839
    %v865 = vsel %vm740, %v258, %v862
    %v866 = vsel %vm740, 0, %v864
    %v867 = vmul.f32 %v865, %v865
    %v868 = vmul.f32 %v867, -0.001358992
    %v869 = vadd.f32 %v868, 0.041655596
    %v870 = vmul.f32 %v867, %v869
    %v871 = vadd.f32 %v870, -0.4999988
    %v872 = vmul.f32 %v867, %v871
    %v873 = vadd.f32 1.0, %v872
    %v874 = vmul.f32 %v865, %v865
    %v875 = vmul.f32 %v874, -0.00019511016
    %v876 = vadd.f32 %v875, 0.008332121
    %v877 = vmul.f32 %v874, %v876
    %v878 = vadd.f32 %v877, -0.16666654
    %v879 = vmul.f32 %v874, %v878
    %v880 = vadd.f32 %v879, 1.0
    %v881 = vmul.f32 %v880, %v865
    %vm882 = vweird.f32 %v258
    %v883 = vadd.s32 %v866, 3
    %v884 = vand.u32 %v883, 3
    %vm885 = vcmp.lt.s32.totalorder %v884, 2
    %vm886 = vcmp.eq.s32.totalorder %v884, 0
    %v887 = vxor.u32 %v881, 2147483648
    %v888 = vsel %vm886, %v873, %v887
    %vm889 = vcmp.eq.s32.totalorder %v884, 2
    %v890 = vxor.u32 %v873, 2147483648
    %v891 = vsel %vm889, %v890, %v881
    %v892 = vsel %vm885, %v888, %v891
    %v893 = vsel %vm882, nan, %v892
    %v894 = vand.u32 2147483647, %v417
    %vm895 = vcmp.le.f32.partialorder %v894, 0.7853982
    %vm896 = vcmp.lt.s32.totalorder %v417, 0
    %v897 = vand.u32 %v417, 2139095040
    %v898 = vshrl.u32 %v897, 23
    %v899 = vsub.s32 %v898, 127
    %v900 = vand.u32 2147483647, %v417
    %v901 = vand.u32 %v900, 8388607
    %v902 = vor.u32 %v901, 8388608
    %v903 = vsub.s32 0, %v902
    %v904 = vadd.s32 %v899, 1
    %vm905 = vcmp.gt.s32.totalorder %v904, 0
    %v906 = vsel %vm905, %v904, 0
    %v907 = vshrl.u32 %v906, 5
    %v908 = vand.u32 %v906, 31
    %v909 = vsub.s32 32, %v908
    %v910 = vshrl.u32 683565275, %v909
    %v911 = vshll.u32 683565275, %v908
    %v912 = vshrl.u32 2475754826, %v909
    %v913 = vor.u32 %v911, %v912
    %v914 = vshll.u32 2475754826, %v908
    %v915 = vshrl.u32 2131351028, %v909
    %v916 = vor.u32 %v914, %v915
    %v917 = vshll.u32 2131351028, %v908
    %v918 = vshrl.u32 2102212464, %v909
    %v919 = vor.u32 %v917, %v918
    %v920 = vshll.u32 2102212464, %v908
    %v921 = vshrl.u32 920167782, %v909
    %v922 = vor.u32 %v920, %v921
    %v923 = vshll.u32 920167782, %v908
    %v924 = vshrl.u32 1326507024, %v909
    %v925 = vor.u32 %v923, %v924
    %vm926 = vcmp.lt.s32.totalorder %v907, 1
    %vm927 = vcmp.lt.s32.totalorder %v907, 2
    %vm928 = vcmp.lt.s32.totalorder %v907, 3
    %vm929 = vcmp.lt.s32.totalorder %v907, 4
    %v930 = vsel %vm926, %v910, %v913
    %v931 = vsel %vm929, %v919, 2102212464
    %v932 = vsel %vm928, %v916, %v931
    %v933 = vsel %vm927, %v930, %v932
    %v934 = vsel %vm926, %v913, %v916
    %v935 = vsel %vm929, %v922, 920167782
    %v936 = vsel %vm928, %v919, %v935
    %v937 = vsel %vm927, %v934, %v936
    %v938 = vsel %vm926, %v916, %v919
    %v939 = vsel %vm929, %v925, 1326507024
    %v940 = vsel %vm928, %v922, %v939
    %v941 = vsel %vm927, %v938, %v940
    %v942 = vshll.u32 %v902, 8
    %v943 = vand.u32 %v942, 65535
    %v944 = vshrl.u32 %v942, 16
    %v945 = vand.u32 %v941, 65535
    %v946 = vshrl.u32 %v941, 16
    %v947 = vmul.u32 %v943, %v945
    %v948 = vmul.u32 %v943, %v946
    %v949 = vmul.u32 %v944, %v945
    %v950 = vmul.u32 %v944, %v946
    %v951 = vshll.u32 %v948, 16
    %v952 = vshrl.u32 %v948, 16
    %v953 = vshll.u32 %v949, 16
    %v954 = vshrl.u32 %v949, 16
    %vm955 = vc.u32 %v947, %v951
    %v956 = vsel %vm955, 1, 0
    %v957 = vadd.s32 %v947, %v951
    %v958 = vadd.s32 %v950, %v956
    %vm959 = vc.u32 %v957, %v953
    %v960 = vsel %vm959, 1, 0
    %v961 = vadd.s32 %v957, %v953
    %v962 = vadd.s32 %v958, %v960
    %v963 = vadd.s32 %v962, %v952
    %v964 = vadd.s32 %v963, %v954
    %v965 = vand.u32 %v942, 65535
    %v966 = vshrl.u32 %v942, 16
    %v967 = vand.u32 %v937, 65535
    %v968 = vshrl.u32 %v937, 16
    %v969 = vmul.u32 %v965, %v967
    %v970 = vmul.u32 %v965, %v968
    %v971 = vmul.u32 %v966, %v967
    %v972 = vmul.u32 %v966, %v968
    %v973 = vshll.u32 %v970, 16
    %v974 = vshrl.u32 %v970, 16
    %v975 = vshll.u32 %v971, 16
    %v976 = vshrl.u32 %v971, 16
    %vm977 = vc.u32 %v969, %v973
    %v978 = vsel %vm977, 1, 0
    %v979 = vadd.s32 %v969, %v973
    %v980 = vadd.s32 %v972, %v978
    %vm981 = vc.u32 %v979, %v975
    %v982 = vsel %vm981, 1, 0
    %v983 = vadd.s32 %v979, %v975
    %v984 = vadd.s32 %v980, %v982
    %v985 = vadd.s32 %v984, %v974
    %v986 = vadd.s32 %v985, %v976
    %v987 = vmul.u32 %v942, %v933
    %v988 = vadd.s32 %v964, %v983
    %vm989 = vc.u32 %v964, %v983
    %v990 = vadd.s32 %v986, 1
    %v991 = vsel %vm989, %v990, %v986
    %v992 = vadd.s32 %v987, %v991
    %v993 = vadd.s32 %v992, 536870912
    %v994 = vshrl.u32 %v993, 30
    %v995 = vshll.u32 %v994, 30
    %v996 = vsub.s32 %v992, %v995
    %vm997 = vcmp.lt.s32.totalorder %v996, 0
    %v998 = vsub.s32 0, %v996
    %v999 = vsel %vm997, %v998, %v996
    %v1000 = vclz %v999
    %v1001 = vsub.s32 %v1000, 2
    %vm1002 = vcmp.gt.s32.totalorder 0, %v1001
    %v1003 = vsel %vm1002, 0, %v1001
    %v1004 = vsub.s32 32, %v1003
    %v1005 = vshll.u32 %v996, %v1003
    %v1006 = vshrl.u32 %v988, %v1004
    %v1007 = vor.u32 %v1005, %v1006
    %v1008 = vsub.s32 4294967266, %v1003
    %v1009 = vadd.s32 %v1008, 127
    %v1010 = vshll.u32 %v1009, 23
    %v1011 = vor.u32 4788187, %v1010
    %v1012 = vand.u32 2147483647, %v1011
    %v1014 = vcvt.s32.f32 %v1007
    %v1015 = vmul.f32 %v1014, %v1012
    %v1016 = vxor.u32 %v1015, 2147483648
    %v1017 = vsel %vm896, %v1016, %v1015
    %v1018 = vsub.s32 4, %v994
    %v1019 = vsel %vm896, %v1018, %v994
    %v1020 = vsel %vm895, %v417, %v1017
    %v1021 = vsel %vm895, 0, %v1019
    %v1022 = vmul.f32 %v1020, %v1020
    %v1023 = vmul.f32 %v1022, -0.001358992
    %v1024 = vadd.f32 %v1023, 0.041655596
    %v1025 = vmul.f32 %v1022, %v1024
    %v1026 = vadd.f32 %v1025, -0.4999988
    %v1027 = vmul.f32 %v1022, %v1026
    %v1028 = vadd.f32 1.0, %v1027
    %v1029 = vmul.f32 %v1020, %v1020
    %v1030 = vmul.f32 %v1029, -0.00019511016
    %v1031 = vadd.f32 %v1030, 0.008332121
    %v1032 = vmul.f32 %v1029, %v1031
    %v1033 = vadd.f32 %v1032, -0.16666654
    %v1034 = vmul.f32 %v1029, %v1033
    %v1035 = vadd.f32 %v1034, 1.0
    %v1036 = vmul.f32 %v1035, %v1020
    %vm1037 = vweird.f32 %v417
    %v1038 = vadd.s32 %v1021, 3
    %v1039 = vand.u32 %v1038, 3
    %vm1040 = vcmp.lt.s32.totalorder %v1039, 2
    %vm1041 = vcmp.eq.s32.totalorder %v1039, 0
    %v1042 = vxor.u32 %v1036, 2147483648
    %v1043 = vsel %vm1041, %v1028, %v1042
    %vm1044 = vcmp.eq.s32.totalorder %v1039, 2
    %v1045 = vxor.u32 %v1028, 2147483648
    %v1046 = vsel %vm1044, %v1045, %v1036
    %v1047 = vsel %vm1040, %v1043, %v1046
    %v1048 = vsel %vm1037, nan, %v1047
    %v1049 = vand.u32 2147483647, %v576
    %vm1050 = vcmp.le.f32.partialorder %v1049, 0.7853982
    %vm1051 = vcmp.lt.s32.totalorder %v576, 0
    %v1052 = vand.u32 %v576, 2139095040
    %v1053 = vshrl.u32 %v1052, 23
    %v1054 = vsub.s32 %v1053, 127
    %v1055 = vand.u32 2147483647, %v576
    %v1056 = vand.u32 %v1055, 8388607
    %v1057 = vor.u32 %v1056, 8388608
    %v1058 = vsub.s32 0, %v1057
    %v1059 = vadd.s32 %v1054, 1
    %vm1060 = vcmp.gt.s32.totalorder %v1059, 0
    %v1061 = vsel %vm1060, %v1059, 0
    %v1062 = vshrl.u32 %v1061, 5
    %v1063 = vand.u32 %v1061, 31
    %v1064 = vsub.s32 32, %v1063
    %v1065 = vshrl.u32 683565275, %v1064
    %v1066 = vshll.u32 683565275, %v1063
    %v1067 = vshrl.u32 2475754826, %v1064
    %v1068 = vor.u32 %v1066, %v1067
    %v1069 = vshll.u32 2475754826, %v1063
    %v1070 = vshrl.u32 2131351028, %v1064
    %v1071 = vor.u32 %v1069, %v1070
    %v1072 = vshll.u32 2131351028, %v1063
    %v1073 = vshrl.u32 2102212464, %v1064
    %v1074 = vor.u32 %v1072, %v1073
    %v1075 = vshll.u32 2102212464, %v1063
    %v1076 = vshrl.u32 920167782, %v1064
    %v1077 = vor.u32 %v1075, %v1076
    %v1078 = vshll.u32 920167782, %v1063
    %v1079 = vshrl.u32 1326507024, %v1064
    %v1080 = vor.u32 %v1078, %v1079
    %vm1081 = vcmp.lt.s32.totalorder %v1062, 1
    %vm1082 = vcmp.lt.s32.totalorder %v1062, 2
    %vm1083 = vcmp.lt.s32.totalorder %v1062, 3
    %vm1084 = vcmp.lt.s32.totalorder %v1062, 4
    %v1085 = vsel %vm1081, %v1065, %v1068
    %v1086 = vsel %vm1084, %v1074, 2102212464
    %v1087 = vsel %vm1083, %v1071, %v1086
    %v1088 = vsel %vm1082, %v1085, %v1087
    %v1089 = vsel %vm1081, %v1068, %v1071
    %v1090 = vsel %vm1084, %v1077, 920167782
    %v1091 = vsel %vm1083, %v1074, %v1090
    %v1092 = vsel %vm1082, %v1089, %v1091
    %v1093 = vsel %vm1081, %v1071, %v1074
    %v1094 = vsel %vm1084, %v1080, 1326507024
    %v1095 = vsel %vm1083, %v1077, %v1094
    %v1096 = vsel %vm1082, %v1093, %v1095
    %v1097 = vshll.u32 %v1057, 8
    %v1098 = vand.u32 %v1097, 65535
    %v1099 = vshrl.u32 %v1097, 16
    %v1100 = vand.u32 %v1096, 65535
    %v1101 = vshrl.u32 %v1096, 16
    %v1102 = vmul.u32 %v1098, %v1100
    %v1103 = vmul.u32 %v1098, %v1101
    %v1104 = vmul.u32 %v1099, %v1100
    %v1105 = vmul.u32 %v1099, %v1101
    %v1106 = vshll.u32 %v1103, 16
    %v1107 = vshrl.u32 %v1103, 16
    %v1108 = vshll.u32 %v1104, 16
    %v1109 = vshrl.u32 %v1104, 16
    %vm1110 = vc.u32 %v1102, %v1106
    %v1111 = vsel %vm1110, 1, 0
    %v1112 = vadd.s32 %v1102, %v1106
    %v1113 = vadd.s32 %v1105, %v1111
    %vm1114 = vc.u32 %v1112, %v1108
    %v1115 = vsel %vm1114, 1, 0
    %v1116 = vadd.s32 %v1112, %v1108
    %v1117 = vadd.s32 %v1113, %v1115
    %v1118 = vadd.s32 %v1117, %v1107
    %v1119 = vadd.s32 %v1118, %v1109
    %v1120 = vand.u32 %v1097, 65535
    %v1121 = vshrl.u32 %v1097, 16
    %v1122 = vand.u32 %v1092, 65535
    %v1123 = vshrl.u32 %v1092, 16
    %v1124 = vmul.u32 %v1120, %v1122
    %v1125 = vmul.u32 %v1120, %v1123
    %v1126 = vmul.u32 %v1121, %v1122
    %v1127 = vmul.u32 %v1121, %v1123
    %v1128 = vshll.u32 %v1125, 16
    %v1129 = vshrl.u32 %v1125, 16
    %v1130 = vshll.u32 %v1126, 16
    %v1131 = vshrl.u32 %v1126, 16
    %vm1132 = vc.u32 %v1124, %v1128
    %v1133 = vsel %vm1132, 1, 0
    %v1134 = vadd.s32 %v1124, %v1128
    %v1135 = vadd.s32 %v1127, %v1133
    %vm1136 = vc.u32 %v1134, %v1130
    %v1137 = vsel %vm1136, 1, 0
    %v1138 = vadd.s32 %v1134, %v1130
    %v1139 = vadd.s32 %v1135, %v1137
    %v1140 = vadd.s32 %v1139, %v1129
    %v1141 = vadd.s32 %v1140, %v1131
    %v1142 = vmul.u32 %v1097, %v1088
    %v1143 = vadd.s32 %v1119, %v1138
    %vm1144 = vc.u32 %v1119, %v1138
    %v1145 = vadd.s32 %v1141, 1
    %v1146 = vsel %vm1144, %v1145, %v1141
    %v1147 = vadd.s32 %v1142, %v1146
    %v1148 = vadd.s32 %v1147, 536870912
    %v1149 = vshrl.u32 %v1148, 30
    %v1150 = vshll.u32 %v1149, 30
    %v1151 = vsub.s32 %v1147, %v1150
    %vm1152 = vcmp.lt.s32.totalorder %v1151, 0
    %v1153 = vsub.s32 0, %v1151
    %v1154 = vsel %vm1152, %v1153, %v1151
    %v1155 = vclz %v1154
    %v1156 = vsub.s32 %v1155, 2
    %vm1157 = vcmp.gt.s32.totalorder 0, %v1156
    %v1158 = vsel %vm1157, 0, %v1156
    %v1159 = vsub.s32 32, %v1158
    %v1160 = vshll.u32 %v1151, %v1158
    %v1161 = vshrl.u32 %v1143, %v1159
    %v1162 = vor.u32 %v1160, %v1161
    %v1163 = vsub.s32 4294967266, %v1158
    %v1164 = vadd.s32 %v1163, 127
    %v1165 = vshll.u32 %v1164, 23
    %v1166 = vor.u32 4788187, %v1165
    %v1167 = vand.u32 2147483647, %v1166
    %v1169 = vcvt.s32.f32 %v1162
    %v1170 = vmul.f32 %v1169, %v1167
    %v1171 = vxor.u32 %v1170, 2147483648
    %v1172 = vsel %vm1051, %v1171, %v1170
    %v1173 = vsub.s32 4, %v1149
    %v1174 = vsel %vm1051, %v1173, %v1149
    %v1175 = vsel %vm1050, %v576, %v1172
    %v1176 = vsel %vm1050, 0, %v1174
    %v1177 = vmul.f32 %v1175, %v1175
    %v1178 = vmul.f32 %v1177, -0.001358992
    %v1179 = vadd.f32 %v1178, 0.041655596
    %v1180 = vmul.f32 %v1177, %v1179
    %v1181 = vadd.f32 %v1180, -0.4999988
    %v1182 = vmul.f32 %v1177, %v1181
    %v1183 = vadd.f32 1.0, %v1182
    %v1184 = vmul.f32 %v1175, %v1175
    %v1185 = vmul.f32 %v1184, -0.00019511016
    %v1186 = vadd.f32 %v1185, 0.008332121
    %v1187 = vmul.f32 %v1184, %v1186
    %v1188 = vadd.f32 %v1187, -0.16666654
    %v1189 = vmul.f32 %v1184, %v1188
    %v1190 = vadd.f32 %v1189, 1.0
    %v1191 = vmul.f32 %v1190, %v1175
    %vm1192 = vweird.f32 %v576
    %v1193 = vadd.s32 %v1176, 3
    %v1194 = vand.u32 %v1193, 3
    %vm1195 = vcmp.lt.s32.totalorder %v1194, 2
    %vm1196 = vcmp.eq.s32.totalorder %v1194, 0
    %v1197 = vxor.u32 %v1191, 2147483648
    %v1198 = vsel %vm1196, %v1183, %v1197
    %vm1199 = vcmp.eq.s32.totalorder %v1194, 2
    %v1200 = vxor.u32 %v1183, 2147483648
    %v1201 = vsel %vm1199, %v1200, %v1191
    %v1202 = vsel %vm1195, %v1198, %v1201
    %v1203 = vsel %vm1192, nan, %v1202
    %v1204 = vand.u32 2147483647, %v735
    %vm1205 = vcmp.le.f32.partialorder %v1204, 0.7853982
    %vm1206 = vcmp.lt.s32.totalorder %v735, 0
    %v1207 = vand.u32 %v735, 2139095040
    %v1208 = vshrl.u32 %v1207, 23
    %v1209 = vsub.s32 %v1208, 127
    %v1210 = vand.u32 2147483647, %v735
    %v1211 = vand.u32 %v1210, 8388607
    %v1212 = vor.u32 %v1211, 8388608
    %v1213 = vsub.s32 0, %v1212
    %v1214 = vadd.s32 %v1209, 1
    %vm1215 = vcmp.gt.s32.totalorder %v1214, 0
    %v1216 = vsel %vm1215, %v1214, 0
    %v1217 = vshrl.u32 %v1216, 5
    %v1218 = vand.u32 %v1216, 31
    %v1219 = vsub.s32 32, %v1218
    %v1220 = vshrl.u32 683565275, %v1219
    %v1221 = vshll.u32 683565275, %v1218
    %v1222 = vshrl.u32 2475754826, %v1219
    %v1223 = vor.u32 %v1221, %v1222
    %v1224 = vshll.u32 2475754826, %v1218
    %v1225 = vshrl.u32 2131351028, %v1219
    %v1226 = vor.u32 %v1224, %v1225
    %v1227 = vshll.u32 2131351028, %v1218
    %v1228 = vshrl.u32 2102212464, %v1219
    %v1229 = vor.u32 %v1227, %v1228
    %v1230 = vshll.u32 2102212464, %v1218
    %v1231 = vshrl.u32 920167782, %v1219
    %v1232 = vor.u32 %v1230, %v1231
    %v1233 = vshll.u32 920167782, %v1218
    %v1234 = vshrl.u32 1326507024, %v1219
    %v1235 = vor.u32 %v1233, %v1234
    %vm1236 = vcmp.lt.s32.totalorder %v1217, 1
    %vm1237 = vcmp.lt.s32.totalorder %v1217, 2
    %vm1238 = vcmp.lt.s32.totalorder %v1217, 3
    %vm1239 = vcmp.lt.s32.totalorder %v1217, 4
    %v1240 = vsel %vm1236, %v1220, %v1223
    %v1241 = vsel %vm1239, %v1229, 2102212464
    %v1242 = vsel %vm1238, %v1226, %v1241
    %v1243 = vsel %vm1237, %v1240, %v1242
    %v1244 = vsel %vm1236, %v1223, %v1226
    %v1245 = vsel %vm1239, %v1232, 920167782
    %v1246 = vsel %vm1238, %v1229, %v1245
    %v1247 = vsel %vm1237, %v1244, %v1246
    %v1248 = vsel %vm1236, %v1226, %v1229
    %v1249 = vsel %vm1239, %v1235, 1326507024
    %v1250 = vsel %vm1238, %v1232, %v1249
    %v1251 = vsel %vm1237, %v1248, %v1250
    %v1252 = vshll.u32 %v1212, 8
    %v1253 = vand.u32 %v1252, 65535
    %v1254 = vshrl.u32 %v1252, 16
    %v1255 = vand.u32 %v1251, 65535
    %v1256 = vshrl.u32 %v1251, 16
    %v1257 = vmul.u32 %v1253, %v1255
    %v1258 = vmul.u32 %v1253, %v1256
    %v1259 = vmul.u32 %v1254, %v1255
    %v1260 = vmul.u32 %v1254, %v1256
    %v1261 = vshll.u32 %v1258, 16
    %v1262 = vshrl.u32 %v1258, 16
    %v1263 = vshll.u32 %v1259, 16
    %v1264 = vshrl.u32 %v1259, 16
    %vm1265 = vc.u32 %v1257, %v1261
    %v1266 = vsel %vm1265, 1, 0
    %v1267 = vadd.s32 %v1257, %v1261
    %v1268 = vadd.s32 %v1260, %v1266
    %vm1269 = vc.u32 %v1267, %v1263
    %v1270 = vsel %vm1269, 1, 0
    %v1271 = vadd.s32 %v1267, %v1263
    %v1272 = vadd.s32 %v1268, %v1270
    %v1273 = vadd.s32 %v1272, %v1262
    %v1274 = vadd.s32 %v1273, %v1264
    %v1275 = vand.u32 %v1252, 65535
    %v1276 = vshrl.u32 %v1252, 16
    %v1277 = vand.u32 %v1247, 65535
    %v1278 = vshrl.u32 %v1247, 16
    %v1279 = vmul.u32 %v1275, %v1277
    %v1280 = vmul.u32 %v1275, %v1278
    %v1281 = vmul.u32 %v1276, %v1277
    %v1282 = vmul.u32 %v1276, %v1278
    %v1283 = vshll.u32 %v1280, 16
    %v1284 = vshrl.u32 %v1280, 16
    %v1285 = vshll.u32 %v1281, 16
    %v1286 = vshrl.u32 %v1281, 16
    %vm1287 = vc.u32 %v1279, %v1283
    %v1288 = vsel %vm1287, 1, 0
    %v1289 = vadd.s32 %v1279, %v1283
    %v1290 = vadd.s32 %v1282, %v1288
    %vm1291 = vc.u32 %v1289, %v1285
    %v1292 = vsel %vm1291, 1, 0
    %v1293 = vadd.s32 %v1289, %v1285
    %v1294 = vadd.s32 %v1290, %v1292
    %v1295 = vadd.s32 %v1294, %v1284
    %v1296 = vadd.s32 %v1295, %v1286
    %v1297 = vmul.u32 %v1252, %v1243
    %v1298 = vadd.s32 %v1274, %v1293
    %vm1299 = vc.u32 %v1274, %v1293
    %v1300 = vadd.s32 %v1296, 1
    %v1301 = vsel %vm1299, %v1300, %v1296
    %v1302 = vadd.s32 %v1297, %v1301
    %v1303 = vadd.s32 %v1302, 536870912
    %v1304 = vshrl.u32 %v1303, 30
    %v1305 = vshll.u32 %v1304, 30
    %v1306 = vsub.s32 %v1302, %v1305
    %vm1307 = vcmp.lt.s32.totalorder %v1306, 0
    %v1308 = vsub.s32 0, %v1306
    %v1309 = vsel %vm1307, %v1308, %v1306
    %v1310 = vclz %v1309
    %v1311 = vsub.s32 %v1310, 2
    %vm1312 = vcmp.gt.s32.totalorder 0, %v1311
    %v1313 = vsel %vm1312, 0, %v1311
    %v1314 = vsub.s32 32, %v1313
    %v1315 = vshll.u32 %v1306, %v1313
    %v1316 = vshrl.u32 %v1298, %v1314
    %v1317 = vor.u32 %v1315, %v1316
    %v1318 = vsub.s32 4294967266, %v1313
    %v1319 = vadd.s32 %v1318, 127
    %v1320 = vshll.u32 %v1319, 23
    %v1321 = vor.u32 4788187, %v1320
    %v1322 = vand.u32 2147483647, %v1321
    %v1324 = vcvt.s32.f32 %v1317
    %v1325 = vmul.f32 %v1324, %v1322
    %v1326 = vxor.u32 %v1325, 2147483648
    %v1327 = vsel %vm1206, %v1326, %v1325
    %v1328 = vsub.s32 4, %v1304
    %v1329 = vsel %vm1206, %v1328, %v1304
    %v1330 = vsel %vm1205, %v735, %v1327
    %v1331 = vsel %vm1205, 0, %v1329
    %v1332 = vmul.f32 %v1330, %v1330
    %v1333 = vmul.f32 %v1332, -0.001358992
    %v1334 = vadd.f32 %v1333, 0.041655596
    %v1335 = vmul.f32 %v1332, %v1334
    %v1336 = vadd.f32 %v1335, -0.4999988
    %v1337 = vmul.f32 %v1332, %v1336
    %v1338 = vadd.f32 1.0, %v1337
    %v1339 = vmul.f32 %v1330, %v1330
    %v1340 = vmul.f32 %v1339, -0.00019511016
    %v1341 = vadd.f32 %v1340, 0.008332121
    %v1342 = vmul.f32 %v1339, %v1341
    %v1343 = vadd.f32 %v1342, -0.16666654
    %v1344 = vmul.f32 %v1339, %v1343
    %v1345 = vadd.f32 %v1344, 1.0
    %v1346 = vmul.f32 %v1345, %v1330
    %vm1347 = vweird.f32 %v735
    %v1348 = vadd.s32 %v1331, 3
    %v1349 = vand.u32 %v1348, 3
    %vm1350 = vcmp.lt.s32.totalorder %v1349, 2
    %vm1351 = vcmp.eq.s32.totalorder %v1349, 0
    %v1352 = vxor.u32 %v1346, 2147483648
    %v1353 = vsel %vm1351, %v1338, %v1352
    %vm1354 = vcmp.eq.s32.totalorder %v1349, 2
    %v1355 = vxor.u32 %v1338, 2147483648
    %v1356 = vsel %vm1354, %v1355, %v1346
    %v1357 = vsel %vm1350, %v1353, %v1356
    %v1358 = vsel %vm1347, nan, %v1357
    %v1363 = vrot.slane %v417, 7
    %v1364 = vrot.slane %v576, 6
    %v1365 = vrot.slane %v735, 5
    %vm1366 = vcmask 1040384
    %v1367 = vsel %vm1366, %v258, %v1363
    %vm1368 = vcmask 1042434
    %v1369 = vsel %vm1368, %v1364, %v1365
    %vm1370 = vcmask 1041408
    %v1371 = vsel %vm1370, %v1367, %v1369
    %v1377 = vrot.slane %v1048, 7
    %v1378 = vrot.slane %v1203, 6
    %v1379 = vrot.slane %v1358, 5
    %v1380 = vsel %vm1366, %v893, %v1377
    %v1381 = vsel %vm1368, %v1378, %v1379
    %v1382 = vsel %vm1370, %v1380, %v1381
    %v1384 = vsel %vm738, %v1371, %v1382
    %v1385 = vlaneseq
    %vm1386 = vcmp.ge.s32.totalorder %v1385, 0
    %vm1387 = vcmp.lt.s32.totalorder %v1385, 512
    %vm1388 = vmand %vm1386, %vm1387
    %1389 = vst.msk [vmem:[#allocation10] sm:$0xf] %vm1388, %v1384
    // Predicated region
    $region34: #{tpu_custom_call.1} parent=1 // pred_check
      _
    $region35: #{tpu_custom_call.1} parent=1 // pred_check_branch
      %1391 = sbr.rel (0) target = $region37
    $region36: #{tpu_custom_call.1} parent=1 // pred_region
      %1393 = vsyncadd [#allocation4], 0
      %s1395 = sshll.u32 [#allocation10], 4
      %s1396 = int_to_ptr.vmem [resolvable:$true] %s1395
      %s1397 = sshll.u32 %s4, 4
      %s1398 = int_to_ptr.hbm [resolvable:$true] %s1397
      %1400 = dma.vmem_to_hbm [thread:$0]  %s1396, 64, %s1398, [#allocation4]
    $region37: #{tpu_custom_call.1} parent=1 // pred_fallthru
      _
    // Predicated region
    $region38: #{tpu_custom_call.1} parent=1 // pred_check
      _
    $region39: #{tpu_custom_call.1} parent=1 // pred_check_branch
      %1402 = sbr.rel (0) target = $region41
    $region40: #{tpu_custom_call.1} parent=1 // pred_region
      %1404 = dma.done [#allocation4], 64
    $region41: #{tpu_custom_call.1} parent=1 // pred_fallthru
      _
    %1405 = vsyncpa [#allocation3], 1
    %1406 = vsyncpa [#allocation6], 1
    %1407 = vsyncpa [#allocation9], 1
    %1408 = vsyncpa [#allocation4], 1

</llo_original>
